<compile_context>
chip_gen: v5e
topology: v5e:2x2
jax: 0.10.0
libtpu: 0.0.40
codegen_flags: <defaults>
</compile_context>

<pallas_src>
import jax
import jax.numpy as jnp
from jax.experimental import pallas as pl
from jax.experimental.pallas import tpu as pltpu
from jax.scipy.linalg import block_diag


# ----------------------------------------------------------------------------
# Kernel: PositionEmbeddingLearned hot path (lane-dense packed form)
#   h = relu(x_packed @ W1_bd + shift_bd)    (K = 2g contraction, MXU)
#   o = h @ W2_bd + b2_bd                    (gC x gC matmul, MXU, bf16 in/f32 acc)
# ----------------------------------------------------------------------------
def _posembed_kernel(x_ref, w1_ref, shift_ref, w2_ref, b2_ref, out_ref):
    h = (
        jnp.dot(x_ref[...], w1_ref[...], preferred_element_type=jnp.float32)
        + shift_ref[...]
    )
    h = jnp.maximum(h, 0.0)                                     # ReLU
    out_ref[...] = (
        jnp.dot(h.astype(jnp.bfloat16), w2_ref[...],
                preferred_element_type=jnp.float32)
        + b2_ref[...]
    )


# Below this many output elements the pallas_call is pure launch overhead.
_PALLAS_MIN_ELEMENTS = 64 * 1024
# Fixed VMEM-budgeted tile, in packed (128-lane) rows. 512 x 128 x 4B = 256 KiB
# per buffered tile -> well under the v7x 32 MiB scoped VMEM default even
# double-buffered, while giving a multi-step grid at production row counts.
_BLOCK_PACKED_ROWS = 512


def posembed_forward(xy_flat, params, *, force_pallas=False):
    """xy_flat: (R, 2) f32 (rows = flattened num_query*batch) -> (R, C) f32."""
    w1, shift, w2t, b2 = params        # (2,C), (1,C), (C,C), (1,C)
    C = w1.shape[1]
    R = xy_flat.shape[0]

    # Tiny-shape fallback: XLA fuses this trivially; a kernel launch would be
    # ~100% overhead (same argument used to drop the reference_points kernel).
    if not force_pallas and R * C < _PALLAS_MIN_ELEMENTS:
        return jnp.maximum(xy_flat @ w1 + shift, 0.0) @ w2t + b2

    # Lane-dense packing: pack g = 128//C consecutive rows into one 128-lane row.
    g = 128 // C if (C < 128 and 128 % C == 0) else 1
    gC = g * C

    if g > 1:
        w1_bd = block_diag(*([w1] * g))          # (2g, gC)
        w2_bd = block_diag(*([w2t] * g))         # (gC, gC)
        shift_bd = jnp.tile(shift, (1, g))       # (1, gC)
        b2_bd = jnp.tile(b2, (1, g))             # (1, gC)
    else:
        w1_bd, w2_bd, shift_bd, b2_bd = w1, w2t, shift, b2
    w2_bd = w2_bd.astype(jnp.bfloat16)           # halve W2 DMA bytes; f32 accumulate

    # Pad rows so packed rows are a sublane multiple of 8.
    row_mult = 8 * g
    R_pad = ((R + row_mult - 1) // row_mult) * row_mult
    if R_pad != R:
        xy_flat = jnp.pad(xy_flat, ((0, R_pad - R), (0, 0)))
    Rp = R_pad // g
    xy_packed = xy_flat.reshape(Rp, 2 * g)       # free row-major reshape

    # Fixed-size row tiles -> multi-step "parallel" grid: intra-core DMA/compute
    # double-buffering, cross-core sharding on v7x, bounded VMEM at any R.
    block_rows = min(_BLOCK_PACKED_ROWS, Rp)
    grid = (pl.cdiv(Rp, block_rows),)

    # Grid-invariant weights: single-buffered (no dead second copy in VMEM).
    def invariant(a):
        return pl.BlockSpec(a.shape, lambda i: (0, 0), pipeline_mode=pl.Buffered(1))

    out_packed = pl.pallas_call(
        _posembed_kernel,
        out_shape=jax.ShapeDtypeStruct((Rp, gC), jnp.float32),
        grid=grid,
        in_specs=[
            pl.BlockSpec((block_rows, 2 * g), lambda i: (i, 0)),
            invariant(w1_bd), invariant(shift_bd),
            invariant(w2_bd), invariant(b2_bd),
        ],
        out_specs=pl.BlockSpec((block_rows, gC), lambda i: (i, 0)),
        compiler_params=pltpu.CompilerParams(
            dimension_semantics=("parallel",),
            vmem_limit_bytes=32 * 1024 * 1024,
        ),
    )(xy_packed, w1_bd, shift_bd, w2_bd, b2_bd)

    out = out_packed.reshape(R_pad, C)           # free row-major unpack
    # Padded rows hold relu(shift)@W2 + b2 garbage -- must stay sliced off.
    return out[:R] if R_pad != R else out


# ----------------------------------------------------------------------------
# Parameter construction: Conv1d weights + eval-mode BatchNorm folded.
#   W1_fold[:, c] = W1[c, :] * scale[c]
#   shift_fold[c] = b1[c] * scale[c] + (beta[c] - running_mean[c] * scale[c])
# ----------------------------------------------------------------------------
def make_posembed_params(key, input_channel, num_pos_feats, eps=1e-5):
    k1, k2, k3, k4, k5, k6, k7, k8 = jax.random.split(key, 8)
    C = num_pos_feats
    w1 = jax.random.normal(k1, (C, input_channel), jnp.float32) * 0.1   # Conv1d 1 weight
    b1 = jax.random.normal(k2, (C,), jnp.float32) * 0.1
    gamma = 1.0 + 0.1 * jax.random.normal(k3, (C,), jnp.float32)        # BN weight
    beta = 0.1 * jax.random.normal(k4, (C,), jnp.float32)               # BN bias
    running_mean = 0.1 * jax.random.normal(k5, (C,), jnp.float32)
    running_var = jnp.abs(jax.random.normal(k6, (C,), jnp.float32)) + 0.5
    w2 = jax.random.normal(k7, (C, C), jnp.float32) * 0.1               # Conv1d 2 weight
    b2 = jax.random.normal(k8, (C,), jnp.float32) * 0.1

    scale = gamma / jnp.sqrt(running_var + eps)
    bn_shift = beta - running_mean * scale

    w1_fold = w1.T * scale[None, :]                  # (input_channel, C)
    shift_fold = (b1 * scale + bn_shift).reshape(1, C)
    return (w1_fold, shift_fold, w2.T, b2.reshape(1, C))


# ----------------------------------------------------------------------------
# Module forward (wrapper / glue)
# ----------------------------------------------------------------------------
def transformer_decoder_layer_with_pos_v2(query, query_pos, reference_points,
                                          valid_ratios, posembed_params):
    # reference_points_input: tiny broadcast multiply, deliberately left to XLA.
    if reference_points.shape[-1] == 4:
        vr = jnp.concatenate([valid_ratios, valid_ratios], axis=-1)
    else:
        assert reference_points.shape[-1] == 2
        vr = valid_ratios
    reference_points_input = reference_points[:, :, None, :] * vr[:, None, :, :]

    # query_pos_embed = posembed(query_pos[:, :, :2]).permute(2, 0, 1)
    # Pre-transpose the tiny (B, N, 2) input to (N, B, 2) and flatten rows so the
    # head output (N*B, C) reshapes for free into the torch (N, B, C) layout.
    B, N, _ = query_pos.shape
    xy_flat = jnp.transpose(query_pos[:, :, :2], (1, 0, 2)).reshape(N * B, 2)
    qpe_flat = posembed_forward(xy_flat, posembed_params)        # (N*B, C)
    C = qpe_flat.shape[-1]
    query_pos_embed = qpe_flat.reshape(N, B, C)                  # (N, B, C)

    # TODO(synk): self.layer = build_transformer_layer(transformerlayers) — inner
    # mmcv transformer layer config not provided; query is passed through and the
    # computed query_pos_embed / reference_points_input are returned.
    output = query
    return output, query_pos_embed, reference_points_input


# ----------------------------------------------------------------------------
if __name__ == "__main__":
    B, Nq, L = 2, 8, 4           # batch, num_query, num_feature_levels
    input_channel, num_pos_feats = 2, 32

    key = jax.random.PRNGKey(0)
    k_q, k_qp, k_rp, k_vr, k_p, k_big = jax.random.split(key, 6)

    query = jax.random.normal(k_q, (Nq, B, num_pos_feats), jnp.float32)
    query_pos = jax.random.normal(k_qp, (B, Nq, 3), jnp.float32)        # uses [:, :, :2]
    reference_points = jax.random.uniform(k_rp, (B, Nq, 2), jnp.float32)
    valid_ratios = jax.random.uniform(k_vr, (B, L, 2), jnp.float32)

    params = make_posembed_params(k_p, input_channel, num_pos_feats)
    w1, shift, w2t, b2 = params

    # ---- Module forward at the small spec shapes (XLA fallback path) ----
    out, qpe, rpi = transformer_decoder_layer_with_pos_v2(
        query, query_pos, reference_points, valid_ratios, params)
    jax.block_until_ready((out, qpe, rpi))

    assert out.shape == (Nq, B, num_pos_feats)
    assert qpe.shape == (Nq, B, num_pos_feats)
    assert rpi.shape == (B, Nq, L, 2)

    xy = query_pos[:, :, :2]                                          # (B, N, 2)
    ref_small = jnp.transpose(jnp.maximum(xy @ w1 + shift, 0.0) @ w2t + b2, (1, 0, 2))
    assert jnp.allclose(qpe, ref_small, rtol=2e-2, atol=2e-2)

    rpi_ref = reference_points[:, :, None, :] * valid_ratios[:, None, :, :]
    assert jnp.allclose(rpi, rpi_ref)

    # ---- Exercise the Pallas kernel path at a production-like row count ----
    # (R*C above the launch-overhead threshold; R chosen to exercise pad+slice.)
    R_big = 4090
    xy_big = jax.random.normal(k_big, (R_big, 2), jnp.float32)
    qpe_big = posembed_forward(xy_big, params)                        # Pallas path
    jax.block_until_ready(qpe_big)
    assert qpe_big.shape == (R_big, num_pos_feats)

    # Tolerance covers the deliberately relaxed MXU precision (bf16 layer-2 matmul).
    ref_big = jnp.maximum(xy_big @ w1 + shift, 0.0) @ w2t + b2
    assert jnp.allclose(qpe_big, ref_big, rtol=2e-2, atol=2e-2)

    print("KERNEL_OK")
</pallas_src>

<mosaic_0001>
module attributes {stable_mosaic.version = 11 : i64} {
  func.func @_posembed_kernel(%arg0: i32, %arg1: memref<512x8xf32, #tpu.memory_space<vmem>>, %arg2: memref<8x128xf32, #tpu.memory_space<vmem>>, %arg3: memref<1x128xf32, #tpu.memory_space<vmem>>, %arg4: memref<128x128xbf16, #tpu.memory_space<vmem>>, %arg5: memref<1x128xf32, #tpu.memory_space<vmem>>, %arg6: memref<512x128xf32, #tpu.memory_space<vmem>>) attributes {dimension_semantics = [#tpu.dimension_semantics<parallel>], iteration_bounds = array<i64: 2>, scalar_prefetch = 0 : i64, scratch_operands = 0 : i64, tpu.core_type = #tpu.core_type<tc>, window_params = [{transform_indices = @transform_0, window_bounds = array<i64: 512, 8>}, {pipeline_mode = #tpu.pipeline_mode<synchronous>, transform_indices = @transform_1, window_bounds = array<i64: 8, 128>}, {pipeline_mode = #tpu.pipeline_mode<synchronous>, transform_indices = @transform_2, window_bounds = array<i64: 1, 128>}, {pipeline_mode = #tpu.pipeline_mode<synchronous>, transform_indices = @transform_3, window_bounds = array<i64: 128, 128>}, {pipeline_mode = #tpu.pipeline_mode<synchronous>, transform_indices = @transform_4, window_bounds = array<i64: 1, 128>}, {transform_indices = @transform_5, window_bounds = array<i64: 512, 128>}]} {
    %c0 = arith.constant 0 : index
    %c0_0 = arith.constant 0 : index
    %0 = vector.load %arg1[%c0, %c0_0] : memref<512x8xf32, #tpu.memory_space<vmem>>, vector<512x8xf32>
    %c0_1 = arith.constant 0 : index
    %c0_2 = arith.constant 0 : index
    %1 = vector.load %arg2[%c0_1, %c0_2] : memref<8x128xf32, #tpu.memory_space<vmem>>, vector<8x128xf32>
    %cst = arith.constant dense<0.000000e+00> : vector<512x128xf32>
    %2 = tpu.matmul %0, %1, %cst {dimension_numbers = #tpu.dot_dimension_numbers<[1], [0], [0], [1], [0, 0, 1, 1], [], []>} : vector<512x8xf32>, vector<8x128xf32>, vector<512x128xf32> -> vector<512x128xf32>
    %c0_3 = arith.constant 0 : index
    %c0_4 = arith.constant 0 : index
    %3 = vector.load %arg3[%c0_3, %c0_4] : memref<1x128xf32, #tpu.memory_space<vmem>>, vector<1x128xf32>
    %4 = vector.broadcast %3 : vector<1x128xf32> to vector<512x128xf32>
    %5 = arith.addf %2, %4 : vector<512x128xf32>
    %cst_5 = arith.constant 0.000000e+00 : f32
    %6 = vector.broadcast %cst_5 : f32 to vector<512x128xf32>
    %7 = arith.maximumf %5, %6 : vector<512x128xf32>
    %8 = arith.truncf %7 : vector<512x128xf32> to vector<512x128xbf16>
    %c0_6 = arith.constant 0 : index
    %c0_7 = arith.constant 0 : index
    %9 = vector.load %arg4[%c0_6, %c0_7] : memref<128x128xbf16, #tpu.memory_space<vmem>>, vector<128x128xbf16>
    %cst_8 = arith.constant dense<0.000000e+00> : vector<512x128xf32>
    %10 = tpu.matmul %8, %9, %cst_8 {dimension_numbers = #tpu.dot_dimension_numbers<[1], [0], [0], [1], [0, 0, 1, 1], [], []>} : vector<512x128xbf16>, vector<128x128xbf16>, vector<512x128xf32> -> vector<512x128xf32>
    %c0_9 = arith.constant 0 : index
    %c0_10 = arith.constant 0 : index
    %11 = vector.load %arg5[%c0_9, %c0_10] : memref<1x128xf32, #tpu.memory_space<vmem>>, vector<1x128xf32>
    %12 = vector.broadcast %11 : vector<1x128xf32> to vector<512x128xf32>
    %13 = arith.addf %10, %12 : vector<512x128xf32>
    %c0_11 = arith.constant 0 : index
    %c0_12 = arith.constant 0 : index
    %14 = vector.load %arg6[%c0_11, %c0_12] : memref<512x128xf32, #tpu.memory_space<vmem>>, vector<512x128xf32>
    tpu.vector_store %arg6[%c0_11, %c0_12], %13 {strides = array<i32>} : memref<512x128xf32, #tpu.memory_space<vmem>>, vector<512x128xf32>,
    return
  }
  func.func @transform_0(%arg0: i32) -> (i32, i32) {
    %c0_i32 = arith.constant 0 : i32
    %c0_i32_0 = arith.constant 0 : i32
    return %arg0, %c0_i32 : i32, i32
  }
  func.func @transform_1(%arg0: i32) -> (i32, i32) {
    %c0_i32 = arith.constant 0 : i32
    %c0_i32_0 = arith.constant 0 : i32
    %c0_i32_1 = arith.constant 0 : i32
    return %c0_i32, %c0_i32_0 : i32, i32
  }
  func.func @transform_2(%arg0: i32) -> (i32, i32) {
    %c0_i32 = arith.constant 0 : i32
    %c0_i32_0 = arith.constant 0 : i32
    %c0_i32_1 = arith.constant 0 : i32
    return %c0_i32, %c0_i32_0 : i32, i32
  }
  func.func @transform_3(%arg0: i32) -> (i32, i32) {
    %c0_i32 = arith.constant 0 : i32
    %c0_i32_0 = arith.constant 0 : i32
    %c0_i32_1 = arith.constant 0 : i32
    return %c0_i32, %c0_i32_0 : i32, i32
  }
  func.func @transform_4(%arg0: i32) -> (i32, i32) {
    %c0_i32 = arith.constant 0 : i32
    %c0_i32_0 = arith.constant 0 : i32
    %c0_i32_1 = arith.constant 0 : i32
    return %c0_i32, %c0_i32_0 : i32, i32
  }
  func.func @transform_5(%arg0: i32) -> (i32, i32) {
    %c0_i32 = arith.constant 0 : i32
    %c0_i32_0 = arith.constant 0 : i32
    return %arg0, %c0_i32 : i32, i32
  }
}

</mosaic_0001>

<llo_original>
// kernel: tpu_custom_call.1
$region0: #{tpu_custom_call.1}
  #allocation0 [shape = 'u32[]', space=smem, size = 0x4, offset = 0x4, fixed_abs, tag = 'smem constant byte address 0x4 - core index']
  #allocation1 [shape = 'u32[72,128]{1,0:T(1,128)}', space=vmem, size = 0x9000, scoped, tag = 'internal scratch']
  %s0 = inlined_call_operand.vmem [shape: f32[1024,8], index: 0, kind: input, shape index: {}]
  %s1 = inlined_call_operand.vmem [shape: f32[8,128], index: 1, kind: input, shape index: {}]
  %s2 = inlined_call_operand.vmem [shape: f32[1,128], index: 2, kind: input, shape index: {}]
  %s3 = inlined_call_operand.vmem [shape: bf16[128,128], index: 3, kind: input, shape index: {}]
  %s4 = inlined_call_operand.vmem [shape: f32[1,128], index: 4, kind: input, shape index: {}]
  %s5 = inlined_call_operand.hbm [shape: f32[1024,128], index: 5, kind: output, shape index: {}]
  %s6 = sld [smem:[#allocation0]]
  $region53: #{tpu_custom_call.1} parent=0
    _
  %s8 = ssub.s32 1, %s6
  %s9 = scalar_select 0, %s8, %s6
  $region1: #{tpu_custom_call.1} parent=0
    #allocation2 [shape = 'u8[524288]{0}', space=vmem, size = 0x80000, scoped, tag = 'output window, operand 0']
    #allocation3 [shape = 's32[2]{0}', space=sflag, size = 0x8, scoped, tag = 'scoped memory for tpu_custom_call.1']
    %10 = vsyncpa [#allocation3], 0
    %s11 = scalar_lea.sflag [#allocation3], 1
    %12 = vsyncpa %s11, 0
    loop: start=0, step=1, limit=4
    $region2: #{tpu_custom_call.1} parent=1 // loop_pre_header
      _
    $region3: #{tpu_custom_call.1} parent=1 // loop_header
      %s14 = sphi 0, %s18
      %p15 = scmp.ge.s32.totalorder %s14, 4
      %s24 = sphi 0, %s26
      %s27 = sphi 0, %s24
      %s28 = sphi 0, %s27
      %s44 = sphi 0, %s28
      %s48 = sphi 0, %s48
      %s50 = sphi 0, %s48
      %s51 = sphi 0, %s50
      %s65 = sphi 0, %s51
      %s69 = sphi 0, %s69
      %s71 = sphi 0, %s69
      %s72 = sphi 0, %s71
      %s86 = sphi 0, %s72
      %s90 = sphi 0, %s90
      %s92 = sphi 0, %s90
      %s93 = sphi 0, %s92
      %s107 = sphi 0, %s93
      %s111 = sphi 0, %s111
      %s113 = sphi 0, %s111
      %s114 = sphi 0, %s113
      %s128 = sphi 0, %s114
      %s134 = sphi 0, %s136
      %s137 = sphi 0, %s134
      %s138 = sphi 0, %s137
      %s154 = sphi 0, %s138
    $region4: #{tpu_custom_call.1} parent=1 // loop_header_branch
      %17 = sbr.rel (%p15) target = $region8
    $region5: #{tpu_custom_call.1} parent=1 // loop_body
      %s19 = ssub.s32 %s14, 1
      %s20 = ssub.s32 %s14, 2
      %s21 = sadd.s32 %s14, 1
      %s22 = ssub.s32 %s14, %s21
      %p23 = scmp.eq.s32.totalorder %s22, 0
      %s25 = sadd.s32 %s24, 1
      %s26 = scalar_select %p23, %s24, %s25
      %p29 = pneg %p23
      %p30 = scmp.eq.s32.totalorder %s14, 1
      %p31 = por %p29, %p30
      %p32 = scmp.ne.s32.totalorder %s24, %s27
      %p33 = scmp.eq.s32.totalorder %s14, 0
      %p34 = por %p32, %p33
      %p35 = scmp.ne.s32.totalorder %s24, %s27
      %p36 = scmp.eq.s32.totalorder %s19, 1
      %p37 = por %p35, %p36
      %p38 = scmp.ne.s32.totalorder %s27, %s28
      %p39 = scmp.eq.s32.totalorder %s19, 0
      %p40 = por %p38, %p39
      %p41 = scmp.ne.s32.totalorder %s27, %s28
      %p42 = scmp.eq.s32.totalorder %s20, 1
      %p43 = por %p41, %p42
      %p45 = scmp.ne.s32.totalorder %s28, %s44
      %p46 = scmp.eq.s32.totalorder %s20, 0
      %p47 = por %p45, %p46
      %s49 = sadd.s32 %s48, 1
      %p52 = scmp.eq.s32.totalorder %s14, 1
      %p53 = scmp.ne.s32.totalorder %s48, %s50
      %p54 = scmp.eq.s32.totalorder %s14, 0
      %p55 = por %p53, %p54
      %p56 = scmp.ne.s32.totalorder %s48, %s50
      %p57 = scmp.eq.s32.totalorder %s19, 1
      %p58 = por %p56, %p57
      %p59 = scmp.ne.s32.totalorder %s50, %s51
      %p60 = scmp.eq.s32.totalorder %s19, 0
      %p61 = por %p59, %p60
      %p62 = scmp.ne.s32.totalorder %s50, %s51
      %p63 = scmp.eq.s32.totalorder %s20, 1
      %p64 = por %p62, %p63
      %p66 = scmp.ne.s32.totalorder %s51, %s65
      %p67 = scmp.eq.s32.totalorder %s20, 0
      %p68 = por %p66, %p67
      %s70 = sadd.s32 %s69, 1
      %p73 = scmp.eq.s32.totalorder %s14, 1
      %p74 = scmp.ne.s32.totalorder %s69, %s71
      %p75 = scmp.eq.s32.totalorder %s14, 0
      %p76 = por %p74, %p75
      %p77 = scmp.ne.s32.totalorder %s69, %s71
      %p78 = scmp.eq.s32.totalorder %s19, 1
      %p79 = por %p77, %p78
      %p80 = scmp.ne.s32.totalorder %s71, %s72
      %p81 = scmp.eq.s32.totalorder %s19, 0
      %p82 = por %p80, %p81
      %p83 = scmp.ne.s32.totalorder %s71, %s72
      %p84 = scmp.eq.s32.totalorder %s20, 1
      %p85 = por %p83, %p84
      %p87 = scmp.ne.s32.totalorder %s72, %s86
      %p88 = scmp.eq.s32.totalorder %s20, 0
      %p89 = por %p87, %p88
      %s91 = sadd.s32 %s90, 1
      %p94 = scmp.eq.s32.totalorder %s14, 1
      %p95 = scmp.ne.s32.totalorder %s90, %s92
      %p96 = scmp.eq.s32.totalorder %s14, 0
      %p97 = por %p95, %p96
      %p98 = scmp.ne.s32.totalorder %s90, %s92
      %p99 = scmp.eq.s32.totalorder %s19, 1
      %p100 = por %p98, %p99
      %p101 = scmp.ne.s32.totalorder %s92, %s93
      %p102 = scmp.eq.s32.totalorder %s19, 0
      %p103 = por %p101, %p102
      %p104 = scmp.ne.s32.totalorder %s92, %s93
      %p105 = scmp.eq.s32.totalorder %s20, 1
      %p106 = por %p104, %p105
      %p108 = scmp.ne.s32.totalorder %s93, %s107
      %p109 = scmp.eq.s32.totalorder %s20, 0
      %p110 = por %p108, %p109
      %s112 = sadd.s32 %s111, 1
      %p115 = scmp.eq.s32.totalorder %s14, 1
      %p116 = scmp.ne.s32.totalorder %s111, %s113
      %p117 = scmp.eq.s32.totalorder %s14, 0
      %p118 = por %p116, %p117
      %p119 = scmp.ne.s32.totalorder %s111, %s113
      %p120 = scmp.eq.s32.totalorder %s19, 1
      %p121 = por %p119, %p120
      %p122 = scmp.ne.s32.totalorder %s113, %s114
      %p123 = scmp.eq.s32.totalorder %s19, 0
      %p124 = por %p122, %p123
      %p125 = scmp.ne.s32.totalorder %s113, %s114
      %p126 = scmp.eq.s32.totalorder %s20, 1
      %p127 = por %p125, %p126
      %p129 = scmp.ne.s32.totalorder %s114, %s128
      %p130 = scmp.eq.s32.totalorder %s20, 0
      %p131 = por %p129, %p130
      %s132 = ssub.s32 %s14, %s21
      %p133 = scmp.eq.s32.totalorder %s132, 0
      %s135 = sadd.s32 %s134, 1
      %s136 = scalar_select %p133, %s134, %s135
      %p139 = pneg %p133
      %p140 = scmp.eq.s32.totalorder %s14, 1
      %p141 = por %p139, %p140
      %p142 = scmp.ne.s32.totalorder %s134, %s137
      %p143 = scmp.eq.s32.totalorder %s14, 0
      %p144 = por %p142, %p143
      %p145 = scmp.ne.s32.totalorder %s134, %s137
      %p146 = scmp.eq.s32.totalorder %s19, 1
      %p147 = por %p145, %p146
      %p148 = scmp.ne.s32.totalorder %s137, %s138
      %p149 = scmp.eq.s32.totalorder %s19, 0
      %p150 = por %p148, %p149
      %p151 = scmp.ne.s32.totalorder %s137, %s138
      %p152 = scmp.eq.s32.totalorder %s20, 1
      %p153 = por %p151, %p152
      %p155 = scmp.ne.s32.totalorder %s138, %s154
      %p156 = scmp.eq.s32.totalorder %s20, 0
      %p157 = por %p155, %p156
      %p158 = scmp.le.s32.totalorder 1, %s14
      %p159 = scmp.lt.s32.totalorder %s14, 3
      %p160 = pnand %p158, %p159
      %p161 = pneg %p160
      // Predicated region
      $region9: #{tpu_custom_call.1} parent=5 // pred_check
        _
      $region10: #{tpu_custom_call.1} parent=5 // pred_check_branch
        %163 = sbr.rel (%p160) target = $region12
      $region11: #{tpu_custom_call.1} parent=5 // pred_region
        %s164 = ssub.s32 %s14, 1
        // Predicated region
        $region13: #{tpu_custom_call.1} parent=11 // pred_check
          %p165 = pneg %p61
        $region14: #{tpu_custom_call.1} parent=11 // pred_check_branch
          %167 = sbr.rel (%p165) target = $region16
        $region15: #{tpu_custom_call.1} parent=11 // pred_region
          _
        $region16: #{tpu_custom_call.1} parent=11 // pred_fallthru
          _
        // Predicated region
        $region17: #{tpu_custom_call.1} parent=11 // pred_check
          %p168 = pneg %p82
        $region18: #{tpu_custom_call.1} parent=11 // pred_check_branch
          %170 = sbr.rel (%p168) target = $region20
        $region19: #{tpu_custom_call.1} parent=11 // pred_region
          _
        $region20: #{tpu_custom_call.1} parent=11 // pred_fallthru
          _
        // Predicated region
        $region21: #{tpu_custom_call.1} parent=11 // pred_check
          %p171 = pneg %p103
        $region22: #{tpu_custom_call.1} parent=11 // pred_check_branch
          %173 = sbr.rel (%p171) target = $region24
        $region23: #{tpu_custom_call.1} parent=11 // pred_region
          _
        $region24: #{tpu_custom_call.1} parent=11 // pred_fallthru
          _
        // Predicated region
        $region25: #{tpu_custom_call.1} parent=11 // pred_check
          %p174 = pneg %p124
        $region26: #{tpu_custom_call.1} parent=11 // pred_check_branch
          %176 = sbr.rel (%p174) target = $region28
        $region27: #{tpu_custom_call.1} parent=11 // pred_region
          _
        $region28: #{tpu_custom_call.1} parent=11 // pred_fallthru
          _
      $region12: #{tpu_custom_call.1} parent=5 // pred_fallthru
        _
      %p177 = scmp.lt.s32.totalorder %s14, 2
      // Predicated region
      $region29: #{tpu_custom_call.1} parent=5 // pred_check
        %p178 = pneg %p177
      $region30: #{tpu_custom_call.1} parent=5 // pred_check_branch
        %180 = sbr.rel (%p178) target = $region32
      $region31: #{tpu_custom_call.1} parent=5 // pred_region
        // Predicated region
        $region33: #{tpu_custom_call.1} parent=31 // pred_check
          %p181 = pneg %p34
        $region34: #{tpu_custom_call.1} parent=31 // pred_check_branch
          %183 = sbr.rel (%p181) target = $region36
        $region35: #{tpu_custom_call.1} parent=31 // pred_region
          %s184 = smul.u32 64, %s14
          %p185 = scmp.lt.s32.totalorder %s184, 127
          %s186 = scalar_select %p185, %s184, 127
          %s187 = smul.addr %s186, 8
          %s188 = scalar_lea.vmem %s0, %s187
          %s189 = smul.u32 64, %s14
        $region36: #{tpu_custom_call.1} parent=31 // pred_fallthru
          _
      $region32: #{tpu_custom_call.1} parent=5 // pred_fallthru
        _
      %p190 = scmp.le.s32.totalorder 1, %s14
      %p191 = scmp.lt.s32.totalorder %s14, 3
      %p192 = pnand %p190, %p191
      %p193 = pneg %p192
      // Predicated region
      $region37: #{tpu_custom_call.1} parent=5 // pred_check
        _
      $region38: #{tpu_custom_call.1} parent=5 // pred_check_branch
        %195 = sbr.rel (%p192) target = $region40
      $region39: #{tpu_custom_call.1} parent=5 // pred_region
        %s196 = ssub.s32 %s14, 1
        %s197 = smul.u32 64, %s19
        %p198 = scmp.lt.s32.totalorder %s197, 127
        %s199 = scalar_select %p198, %s197, 127
        %s200 = smul.addr %s199, 8
        %s201 = scalar_lea.vmem %s0, %s200
        %p202 = pneg %p40
        %p203 = pneg %p37
        %p204 = pneg %p61
        %p205 = pneg %p58
        %p206 = pneg %p82
        %p207 = pneg %p79
        %p208 = pneg %p103
        %p209 = pneg %p100
        %p210 = pneg %p124
        %p211 = pneg %p121
        %p212 = pneg %p150
        %p213 = pneg %p147
        %s214 = sand.u32 %s137, 1
        %s215 = scalar_lea.sflag [#allocation3], %s214
        %s216 = sand.u32 %s137, 1
        %s217 = smul.addr %s216, 512
        %s218 = scalar_lea.vmem [#allocation2], %s217
        %s219 = smul.u32 64, %s19
        %p220 = scmp.lt.s32.totalorder %s219, 127
        %s221 = scalar_select %p220, %s219, 127
        %s222 = smul.addr %s221, 8
        %s223 = scalar_lea.vmem %s0, %s222
        %s224 = smul.u32 64, %s19
        %s225 = smul.u32 64, %s19
        %v226 = vld [vmem:[%s223] sm:$0xff]
        %v227 = vld [vmem:[%s223 + $0x8] sm:$0xff]
        %v228 = vld [vmem:[%s223 + $0x10] sm:$0xff]
        %v229 = vld [vmem:[%s223 + $0x18] sm:$0xff]
        %v230 = vld [vmem:[%s223 + $0x20] sm:$0xff]
        %v231 = vld [vmem:[%s223 + $0x28] sm:$0xff]
        %v232 = vld [vmem:[%s223 + $0x30] sm:$0xff]
        %v233 = vld [vmem:[%s223 + $0x38] sm:$0xff]
        %v234 = vld [vmem:[%s223 + $0x40] sm:$0xff]
        %v235 = vld [vmem:[%s223 + $0x48] sm:$0xff]
        %v236 = vld [vmem:[%s223 + $0x50] sm:$0xff]
        %v237 = vld [vmem:[%s223 + $0x58] sm:$0xff]
        %v238 = vld [vmem:[%s223 + $0x60] sm:$0xff]
        %v239 = vld [vmem:[%s223 + $0x68] sm:$0xff]
        %v240 = vld [vmem:[%s223 + $0x70] sm:$0xff]
        %v241 = vld [vmem:[%s223 + $0x78] sm:$0xff]
        %v242 = vld [vmem:[%s223 + $0x80] sm:$0xff]
        %v243 = vld [vmem:[%s223 + $0x88] sm:$0xff]
        %v244 = vld [vmem:[%s223 + $0x90] sm:$0xff]
        %v245 = vld [vmem:[%s223 + $0x98] sm:$0xff]
        %v246 = vld [vmem:[%s223 + $0xa0] sm:$0xff]
        %v247 = vld [vmem:[%s223 + $0xa8] sm:$0xff]
        %v248 = vld [vmem:[%s223 + $0xb0] sm:$0xff]
        %v249 = vld [vmem:[%s223 + $0xb8] sm:$0xff]
        %v250 = vld [vmem:[%s223 + $0xc0] sm:$0xff]
        %v251 = vld [vmem:[%s223 + $0xc8] sm:$0xff]
        %v252 = vld [vmem:[%s223 + $0xd0] sm:$0xff]
        %v253 = vld [vmem:[%s223 + $0xd8] sm:$0xff]
        %v254 = vld [vmem:[%s223 + $0xe0] sm:$0xff]
        %v255 = vld [vmem:[%s223 + $0xe8] sm:$0xff]
        %v256 = vld [vmem:[%s223 + $0xf0] sm:$0xff]
        %v257 = vld [vmem:[%s223 + $0xf8] sm:$0xff]
        %v258 = vld [vmem:[%s223 + $0x100] sm:$0xff]
        %v259 = vld [vmem:[%s223 + $0x108] sm:$0xff]
        %v260 = vld [vmem:[%s223 + $0x110] sm:$0xff]
        %v261 = vld [vmem:[%s223 + $0x118] sm:$0xff]
        %v262 = vld [vmem:[%s223 + $0x120] sm:$0xff]
        %v263 = vld [vmem:[%s223 + $0x128] sm:$0xff]
        %v264 = vld [vmem:[%s223 + $0x130] sm:$0xff]
        %v265 = vld [vmem:[%s223 + $0x138] sm:$0xff]
        %v266 = vld [vmem:[%s223 + $0x140] sm:$0xff]
        %v267 = vld [vmem:[%s223 + $0x148] sm:$0xff]
        %v268 = vld [vmem:[%s223 + $0x150] sm:$0xff]
        %v269 = vld [vmem:[%s223 + $0x158] sm:$0xff]
        %v270 = vld [vmem:[%s223 + $0x160] sm:$0xff]
        %v271 = vld [vmem:[%s223 + $0x168] sm:$0xff]
        %v272 = vld [vmem:[%s223 + $0x170] sm:$0xff]
        %v273 = vld [vmem:[%s223 + $0x178] sm:$0xff]
        %v274 = vld [vmem:[%s223 + $0x180] sm:$0xff]
        %v275 = vld [vmem:[%s223 + $0x188] sm:$0xff]
        %v276 = vld [vmem:[%s223 + $0x190] sm:$0xff]
        %v277 = vld [vmem:[%s223 + $0x198] sm:$0xff]
        %v278 = vld [vmem:[%s223 + $0x1a0] sm:$0xff]
        %v279 = vld [vmem:[%s223 + $0x1a8] sm:$0xff]
        %v280 = vld [vmem:[%s223 + $0x1b0] sm:$0xff]
        %v281 = vld [vmem:[%s223 + $0x1b8] sm:$0xff]
        %v282 = vld [vmem:[%s223 + $0x1c0] sm:$0xff]
        %v283 = vld [vmem:[%s223 + $0x1c8] sm:$0xff]
        %v284 = vld [vmem:[%s223 + $0x1d0] sm:$0xff]
        %v285 = vld [vmem:[%s223 + $0x1d8] sm:$0xff]
        %v286 = vld [vmem:[%s223 + $0x1e0] sm:$0xff]
        %v287 = vld [vmem:[%s223 + $0x1e8] sm:$0xff]
        %v288 = vld [vmem:[%s223 + $0x1f0] sm:$0xff]
        %v289 = vld [vmem:[%s223 + $0x1f8] sm:$0xff]
        %v290 = vld [vmem:[%s1] sm:$0xff]
        %v291 = vld [vmem:[%s2] sm:$0x1]
        %v293 = vperm.slane %v291, 0
        %vm295 = vcmask 64512
        %v297 = vsel %vm295, %v226, 0
        %v300 = vsel %vm295, %v227, 0
        %v303 = vsel %vm295, %v228, 0
        %v306 = vsel %vm295, %v229, 0
        %v309 = vsel %vm295, %v230, 0
        %v312 = vsel %vm295, %v231, 0
        %v315 = vsel %vm295, %v232, 0
        %v318 = vsel %vm295, %v233, 0
        %v321 = vsel %vm295, %v234, 0
        %v324 = vsel %vm295, %v235, 0
        %v327 = vsel %vm295, %v236, 0
        %v330 = vsel %vm295, %v237, 0
        %v333 = vsel %vm295, %v238, 0
        %v336 = vsel %vm295, %v239, 0
        %v339 = vsel %vm295, %v240, 0
        %v342 = vsel %vm295, %v241, 0
        %v345 = vsel %vm295, %v242, 0
        %v348 = vsel %vm295, %v243, 0
        %v351 = vsel %vm295, %v244, 0
        %v354 = vsel %vm295, %v245, 0
        %v357 = vsel %vm295, %v246, 0
        %v360 = vsel %vm295, %v247, 0
        %v363 = vsel %vm295, %v248, 0
        %v366 = vsel %vm295, %v249, 0
        %v369 = vsel %vm295, %v250, 0
        %v372 = vsel %vm295, %v251, 0
        %v375 = vsel %vm295, %v252, 0
        %v378 = vsel %vm295, %v253, 0
        %v381 = vsel %vm295, %v254, 0
        %v384 = vsel %vm295, %v255, 0
        %v387 = vsel %vm295, %v256, 0
        %v390 = vsel %vm295, %v257, 0
        %v393 = vsel %vm295, %v258, 0
        %v396 = vsel %vm295, %v259, 0
        %v399 = vsel %vm295, %v260, 0
        %v402 = vsel %vm295, %v261, 0
        %v405 = vsel %vm295, %v262, 0
        %v408 = vsel %vm295, %v263, 0
        %v411 = vsel %vm295, %v264, 0
        %v414 = vsel %vm295, %v265, 0
        %v417 = vsel %vm295, %v266, 0
        %v420 = vsel %vm295, %v267, 0
        %v423 = vsel %vm295, %v268, 0
        %v426 = vsel %vm295, %v269, 0
        %v429 = vsel %vm295, %v270, 0
        %v432 = vsel %vm295, %v271, 0
        %v435 = vsel %vm295, %v272, 0
        %v438 = vsel %vm295, %v273, 0
        %v441 = vsel %vm295, %v274, 0
        %v444 = vsel %vm295, %v275, 0
        %v447 = vsel %vm295, %v276, 0
        %v450 = vsel %vm295, %v277, 0
        %v453 = vsel %vm295, %v278, 0
        %v456 = vsel %vm295, %v279, 0
        %v459 = vsel %vm295, %v280, 0
        %v462 = vsel %vm295, %v281, 0
        %v465 = vsel %vm295, %v282, 0
        %v468 = vsel %vm295, %v283, 0
        %v471 = vsel %vm295, %v284, 0
        %v474 = vsel %vm295, %v285, 0
        %v477 = vsel %vm295, %v286, 0
        %v480 = vsel %vm295, %v287, 0
        %v483 = vsel %vm295, %v288, 0
        %v486 = vsel %vm295, %v289, 0
        %488 = vmatpush.msra.mxu0 0.0
        %489 = vmatpush.msra.mxu0 0.0
        %490 = vmatpush.msra.mxu0 0.0
        %491 = vmatpush.msra.mxu0 0.0
        %492 = vmatpush.msra.mxu0 0.0
        %493 = vmatpush.msra.mxu0 0.0
        %494 = vmatpush.msra.mxu0 0.0
        %495 = vmatpush.msra.mxu0 0.0
        %496 = vmatpush.msra.mxu0 0.0
        %497 = vmatpush.msra.mxu0 0.0
        %498 = vmatpush.msra.mxu0 0.0
        %499 = vmatpush.msra.mxu0 0.0
        %500 = vmatpush.msra.mxu0 0.0
        %501 = vmatpush.msra.mxu0 0.0
        %502 = vmatpush.msra.mxu0 0.0
        %503 = vmatpush.msra.mxu0 %v290
        %504 = vmatmul.f32.gmra.mxu0 %v297
        %v505 = vpop.f32.mrf.mxu0
        %v506 = vadd.f32 %v293, %v505
        %507 = vmatmul.f32.gmra.mxu0 %v300
        %v508 = vpop.f32.mrf.mxu0
        %v509 = vadd.f32 %v293, %v508
        %510 = vmatmul.f32.gmra.mxu0 %v303
        %v511 = vpop.f32.mrf.mxu0
        %v512 = vadd.f32 %v293, %v511
        %513 = vmatmul.f32.gmra.mxu0 %v306
        %v514 = vpop.f32.mrf.mxu0
        %v515 = vadd.f32 %v293, %v514
        %516 = vmatmul.f32.gmra.mxu0 %v309
        %v517 = vpop.f32.mrf.mxu0
        %v518 = vadd.f32 %v293, %v517
        %519 = vmatmul.f32.gmra.mxu0 %v312
        %v520 = vpop.f32.mrf.mxu0
        %v521 = vadd.f32 %v293, %v520
        %522 = vmatmul.f32.gmra.mxu0 %v315
        %v523 = vpop.f32.mrf.mxu0
        %v524 = vadd.f32 %v293, %v523
        %525 = vmatmul.f32.gmra.mxu0 %v318
        %v526 = vpop.f32.mrf.mxu0
        %v527 = vadd.f32 %v293, %v526
        %528 = vmatmul.f32.gmra.mxu0 %v321
        %v529 = vpop.f32.mrf.mxu0
        %v530 = vadd.f32 %v293, %v529
        %531 = vmatmul.f32.gmra.mxu0 %v324
        %v532 = vpop.f32.mrf.mxu0
        %v533 = vadd.f32 %v293, %v532
        %534 = vmatmul.f32.gmra.mxu0 %v327
        %v535 = vpop.f32.mrf.mxu0
        %v536 = vadd.f32 %v293, %v535
        %537 = vmatmul.f32.gmra.mxu0 %v330
        %v538 = vpop.f32.mrf.mxu0
        %v539 = vadd.f32 %v293, %v538
        %540 = vmatmul.f32.gmra.mxu0 %v333
        %v541 = vpop.f32.mrf.mxu0
        %v542 = vadd.f32 %v293, %v541
        %543 = vmatmul.f32.gmra.mxu0 %v336
        %v544 = vpop.f32.mrf.mxu0
        %v545 = vadd.f32 %v293, %v544
        %546 = vmatmul.f32.gmra.mxu0 %v339
        %v547 = vpop.f32.mrf.mxu0
        %v548 = vadd.f32 %v293, %v547
        %549 = vmatmul.f32.gmra.mxu0 %v342
        %v550 = vpop.f32.mrf.mxu0
        %v551 = vadd.f32 %v293, %v550
        %552 = vmatmul.f32.gmra.mxu0 %v345
        %v553 = vpop.f32.mrf.mxu0
        %v554 = vadd.f32 %v293, %v553
        %555 = vmatmul.f32.gmra.mxu0 %v348
        %v556 = vpop.f32.mrf.mxu0
        %v557 = vadd.f32 %v293, %v556
        %558 = vmatmul.f32.gmra.mxu0 %v351
        %v559 = vpop.f32.mrf.mxu0
        %v560 = vadd.f32 %v293, %v559
        %561 = vmatmul.f32.gmra.mxu0 %v354
        %v562 = vpop.f32.mrf.mxu0
        %v563 = vadd.f32 %v293, %v562
        %564 = vmatmul.f32.gmra.mxu0 %v357
        %v565 = vpop.f32.mrf.mxu0
        %v566 = vadd.f32 %v293, %v565
        %567 = vmatmul.f32.gmra.mxu0 %v360
        %v568 = vpop.f32.mrf.mxu0
        %v569 = vadd.f32 %v293, %v568
        %570 = vmatmul.f32.gmra.mxu0 %v363
        %v571 = vpop.f32.mrf.mxu0
        %v572 = vadd.f32 %v293, %v571
        %573 = vmatmul.f32.gmra.mxu0 %v366
        %v574 = vpop.f32.mrf.mxu0
        %v575 = vadd.f32 %v293, %v574
        %576 = vmatmul.f32.gmra.mxu0 %v369
        %v577 = vpop.f32.mrf.mxu0
        %v578 = vadd.f32 %v293, %v577
        %579 = vmatmul.f32.gmra.mxu0 %v372
        %v580 = vpop.f32.mrf.mxu0
        %v581 = vadd.f32 %v293, %v580
        %582 = vmatmul.f32.gmra.mxu0 %v375
        %v583 = vpop.f32.mrf.mxu0
        %v584 = vadd.f32 %v293, %v583
        %585 = vmatmul.f32.gmra.mxu0 %v378
        %v586 = vpop.f32.mrf.mxu0
        %v587 = vadd.f32 %v293, %v586
        %588 = vmatmul.f32.gmra.mxu0 %v381
        %v589 = vpop.f32.mrf.mxu0
        %v590 = vadd.f32 %v293, %v589
        %591 = vmatmul.f32.gmra.mxu0 %v384
        %v592 = vpop.f32.mrf.mxu0
        %v593 = vadd.f32 %v293, %v592
        %594 = vmatmul.f32.gmra.mxu0 %v387
        %v595 = vpop.f32.mrf.mxu0
        %v596 = vadd.f32 %v293, %v595
        %597 = vmatmul.f32.gmra.mxu0 %v390
        %v598 = vpop.f32.mrf.mxu0
        %v599 = vadd.f32 %v293, %v598
        %600 = vmatmul.f32.gmra.mxu0 %v393
        %v601 = vpop.f32.mrf.mxu0
        %v602 = vadd.f32 %v293, %v601
        %603 = vmatmul.f32.gmra.mxu0 %v396
        %v604 = vpop.f32.mrf.mxu0
        %v605 = vadd.f32 %v293, %v604
        %606 = vmatmul.f32.gmra.mxu0 %v399
        %v607 = vpop.f32.mrf.mxu0
        %v608 = vadd.f32 %v293, %v607
        %609 = vmatmul.f32.gmra.mxu0 %v402
        %v610 = vpop.f32.mrf.mxu0
        %v611 = vadd.f32 %v293, %v610
        %612 = vmatmul.f32.gmra.mxu0 %v405
        %v613 = vpop.f32.mrf.mxu0
        %v614 = vadd.f32 %v293, %v613
        %615 = vmatmul.f32.gmra.mxu0 %v408
        %v616 = vpop.f32.mrf.mxu0
        %v617 = vadd.f32 %v293, %v616
        %618 = vmatmul.f32.gmra.mxu0 %v411
        %v619 = vpop.f32.mrf.mxu0
        %v620 = vadd.f32 %v293, %v619
        %621 = vmatmul.f32.gmra.mxu0 %v414
        %v622 = vpop.f32.mrf.mxu0
        %v623 = vadd.f32 %v293, %v622
        %624 = vmatmul.f32.gmra.mxu0 %v417
        %v625 = vpop.f32.mrf.mxu0
        %v626 = vadd.f32 %v293, %v625
        %627 = vmatmul.f32.gmra.mxu0 %v420
        %v628 = vpop.f32.mrf.mxu0
        %v629 = vadd.f32 %v293, %v628
        %630 = vmatmul.f32.gmra.mxu0 %v423
        %v631 = vpop.f32.mrf.mxu0
        %v632 = vadd.f32 %v293, %v631
        %633 = vmatmul.f32.gmra.mxu0 %v426
        %v634 = vpop.f32.mrf.mxu0
        %v635 = vadd.f32 %v293, %v634
        %636 = vmatmul.f32.gmra.mxu0 %v429
        %v637 = vpop.f32.mrf.mxu0
        %v638 = vadd.f32 %v293, %v637
        %639 = vmatmul.f32.gmra.mxu0 %v432
        %v640 = vpop.f32.mrf.mxu0
        %v641 = vadd.f32 %v293, %v640
        %642 = vmatmul.f32.gmra.mxu0 %v435
        %v643 = vpop.f32.mrf.mxu0
        %v644 = vadd.f32 %v293, %v643
        %645 = vmatmul.f32.gmra.mxu0 %v438
        %v646 = vpop.f32.mrf.mxu0
        %v647 = vadd.f32 %v293, %v646
        %648 = vmatmul.f32.gmra.mxu0 %v441
        %v649 = vpop.f32.mrf.mxu0
        %v650 = vadd.f32 %v293, %v649
        %651 = vmatmul.f32.gmra.mxu0 %v444
        %v652 = vpop.f32.mrf.mxu0
        %v653 = vadd.f32 %v293, %v652
        %654 = vmatmul.f32.gmra.mxu0 %v447
        %v655 = vpop.f32.mrf.mxu0
        %v656 = vadd.f32 %v293, %v655
        %657 = vmatmul.f32.gmra.mxu0 %v450
        %v658 = vpop.f32.mrf.mxu0
        %v659 = vadd.f32 %v293, %v658
        %660 = vmatmul.f32.gmra.mxu0 %v453
        %v661 = vpop.f32.mrf.mxu0
        %v662 = vadd.f32 %v293, %v661
        %663 = vmatmul.f32.gmra.mxu0 %v456
        %v664 = vpop.f32.mrf.mxu0
        %v665 = vadd.f32 %v293, %v664
        %666 = vmatmul.f32.gmra.mxu0 %v459
        %v667 = vpop.f32.mrf.mxu0
        %v668 = vadd.f32 %v293, %v667
        %669 = vmatmul.f32.gmra.mxu0 %v462
        %v670 = vpop.f32.mrf.mxu0
        %v671 = vadd.f32 %v293, %v670
        %672 = vmatmul.f32.gmra.mxu0 %v465
        %v673 = vpop.f32.mrf.mxu0
        %v674 = vadd.f32 %v293, %v673
        %675 = vmatmul.f32.gmra.mxu0 %v468
        %v676 = vpop.f32.mrf.mxu0
        %v677 = vadd.f32 %v293, %v676
        %678 = vmatmul.f32.gmra.mxu0 %v471
        %v679 = vpop.f32.mrf.mxu0
        %v680 = vadd.f32 %v293, %v679
        %681 = vmatmul.f32.gmra.mxu0 %v474
        %v682 = vpop.f32.mrf.mxu0
        %v683 = vadd.f32 %v293, %v682
        %684 = vmatmul.f32.gmra.mxu0 %v477
        %v685 = vpop.f32.mrf.mxu0
        %v686 = vadd.f32 %v293, %v685
        %687 = vmatmul.f32.gmra.mxu0 %v480
        %v688 = vpop.f32.mrf.mxu0
        %v689 = vadd.f32 %v293, %v688
        %690 = vmatmul.f32.gmra.mxu0 %v483
        %v691 = vpop.f32.mrf.mxu0
        %v692 = vadd.f32 %v293, %v691
        %693 = vmatmul.f32.gmra.mxu0 %v486
        %v694 = vpop.f32.mrf.mxu0
        %v695 = vadd.f32 %v293, %v694
        %696 = vdwg.mxu0
        %v697 = vmax.f32 %v506, 0.0
        %v698 = vmax.f32 %v509, 0.0
        %v699 = vmax.f32 %v512, 0.0
        %v700 = vmax.f32 %v515, 0.0
        %v701 = vmax.f32 %v518, 0.0
        %v702 = vmax.f32 %v521, 0.0
        %v703 = vmax.f32 %v524, 0.0
        %v704 = vmax.f32 %v527, 0.0
        %v705 = vmax.f32 %v530, 0.0
        %v706 = vmax.f32 %v533, 0.0
        %v707 = vmax.f32 %v536, 0.0
        %v708 = vmax.f32 %v539, 0.0
        %v709 = vmax.f32 %v542, 0.0
        %v710 = vmax.f32 %v545, 0.0
        %v711 = vmax.f32 %v548, 0.0
        %v712 = vmax.f32 %v551, 0.0
        %v713 = vmax.f32 %v554, 0.0
        %v714 = vmax.f32 %v557, 0.0
        %v715 = vmax.f32 %v560, 0.0
        %v716 = vmax.f32 %v563, 0.0
        %v717 = vmax.f32 %v566, 0.0
        %v718 = vmax.f32 %v569, 0.0
        %v719 = vmax.f32 %v572, 0.0
        %v720 = vmax.f32 %v575, 0.0
        %v721 = vmax.f32 %v578, 0.0
        %v722 = vmax.f32 %v581, 0.0
        %v723 = vmax.f32 %v584, 0.0
        %v724 = vmax.f32 %v587, 0.0
        %v725 = vmax.f32 %v590, 0.0
        %v726 = vmax.f32 %v593, 0.0
        %v727 = vmax.f32 %v596, 0.0
        %v728 = vmax.f32 %v599, 0.0
        %v729 = vmax.f32 %v602, 0.0
        %v730 = vmax.f32 %v605, 0.0
        %v731 = vmax.f32 %v608, 0.0
        %v732 = vmax.f32 %v611, 0.0
        %v733 = vmax.f32 %v614, 0.0
        %v734 = vmax.f32 %v617, 0.0
        %v735 = vmax.f32 %v620, 0.0
        %v736 = vmax.f32 %v623, 0.0
        %v737 = vmax.f32 %v626, 0.0
        %v738 = vmax.f32 %v629, 0.0
        %v739 = vmax.f32 %v632, 0.0
        %v740 = vmax.f32 %v635, 0.0
        %v741 = vmax.f32 %v638, 0.0
        %v742 = vmax.f32 %v641, 0.0
        %v743 = vmax.f32 %v644, 0.0
        %v744 = vmax.f32 %v647, 0.0
        %v745 = vmax.f32 %v650, 0.0
        %v746 = vmax.f32 %v653, 0.0
        %v747 = vmax.f32 %v656, 0.0
        %v748 = vmax.f32 %v659, 0.0
        %v749 = vmax.f32 %v662, 0.0
        %v750 = vmax.f32 %v665, 0.0
        %v751 = vmax.f32 %v668, 0.0
        %v752 = vmax.f32 %v671, 0.0
        %v753 = vmax.f32 %v674, 0.0
        %v754 = vmax.f32 %v677, 0.0
        %v755 = vmax.f32 %v680, 0.0
        %v756 = vmax.f32 %v683, 0.0
        %v757 = vmax.f32 %v686, 0.0
        %v758 = vmax.f32 %v689, 0.0
        %v759 = vmax.f32 %v692, 0.0
        %v760 = vmax.f32 %v695, 0.0
        %v761 = vpack.c.bf16 %v698, %v697
        %v762 = vpack.c.bf16 %v700, %v699
        %v763 = vpack.c.bf16 %v702, %v701
        %v764 = vpack.c.bf16 %v704, %v703
        %v765 = vpack.c.bf16 %v706, %v705
        %v766 = vpack.c.bf16 %v708, %v707
        %v767 = vpack.c.bf16 %v710, %v709
        %v768 = vpack.c.bf16 %v712, %v711
        %v769 = vpack.c.bf16 %v714, %v713
        %v770 = vpack.c.bf16 %v716, %v715
        %v771 = vpack.c.bf16 %v718, %v717
        %v772 = vpack.c.bf16 %v720, %v719
        %v773 = vpack.c.bf16 %v722, %v721
        %v774 = vpack.c.bf16 %v724, %v723
        %v775 = vpack.c.bf16 %v726, %v725
        %v776 = vpack.c.bf16 %v728, %v727
        %v777 = vpack.c.bf16 %v730, %v729
        %v778 = vpack.c.bf16 %v732, %v731
        %v779 = vpack.c.bf16 %v734, %v733
        %v780 = vpack.c.bf16 %v736, %v735
        %v781 = vpack.c.bf16 %v738, %v737
        %v782 = vpack.c.bf16 %v740, %v739
        %v783 = vpack.c.bf16 %v742, %v741
        %v784 = vpack.c.bf16 %v744, %v743
        %v785 = vpack.c.bf16 %v746, %v745
        %v786 = vpack.c.bf16 %v748, %v747
        %v787 = vpack.c.bf16 %v750, %v749
        %v788 = vpack.c.bf16 %v752, %v751
        %v789 = vpack.c.bf16 %v754, %v753
        %v790 = vpack.c.bf16 %v756, %v755
        %v791 = vpack.c.bf16 %v758, %v757
        %v792 = vpack.c.bf16 %v760, %v759
        %v793 = vld [vmem:[%s3] sm:$0xf]
        %v794 = vld [vmem:[%s3 + $0x4] sm:$0xf]
        %v795 = vld [vmem:[%s3 + $0x8] sm:$0xf]
        %v796 = vld [vmem:[%s3 + $0xc] sm:$0xf]
        %v797 = vld [vmem:[%s3 + $0x10] sm:$0xf]
        %v798 = vld [vmem:[%s3 + $0x14] sm:$0xf]
        %v799 = vld [vmem:[%s3 + $0x18] sm:$0xf]
        %v800 = vld [vmem:[%s3 + $0x1c] sm:$0xf]
        %v801 = vld [vmem:[%s3 + $0x20] sm:$0xf]
        %v802 = vld [vmem:[%s3 + $0x24] sm:$0xf]
        %v803 = vld [vmem:[%s3 + $0x28] sm:$0xf]
        %v804 = vld [vmem:[%s3 + $0x2c] sm:$0xf]
        %v805 = vld [vmem:[%s3 + $0x30] sm:$0xf]
        %v806 = vld [vmem:[%s3 + $0x34] sm:$0xf]
        %v807 = vld [vmem:[%s3 + $0x38] sm:$0xf]
        %v808 = vld [vmem:[%s3 + $0x3c] sm:$0xf]
        %v809 = vld [vmem:[%s4] sm:$0x1]
        %v811 = vperm.slane %v809, 0
        %v829 = vunpack.c.l.b16 %v793
        %v830 = vunpack.c.l.b16 %v794
        %v831 = vunpack.c.l.b16 %v795
        %v832 = vunpack.c.l.b16 %v796
        %v833 = vunpack.c.l.b16 %v797
        %v834 = vunpack.c.l.b16 %v798
        %v835 = vunpack.c.l.b16 %v799
        %v836 = vunpack.c.l.b16 %v800
        %v837 = vunpack.c.l.b16 %v801
        %v838 = vunpack.c.l.b16 %v802
        %v839 = vunpack.c.l.b16 %v803
        %v840 = vunpack.c.l.b16 %v804
        %v841 = vunpack.c.l.b16 %v805
        %v842 = vunpack.c.l.b16 %v806
        %v843 = vunpack.c.l.b16 %v807
        %v844 = vunpack.c.l.b16 %v808
        %v845 = vpack.c.b16 %v830, %v829
        %v846 = vpack.c.b16 %v832, %v831
        %v847 = vpack.c.b16 %v834, %v833
        %v848 = vpack.c.b16 %v836, %v835
        %v849 = vpack.c.b16 %v838, %v837
        %v850 = vpack.c.b16 %v840, %v839
        %v851 = vpack.c.b16 %v842, %v841
        %v852 = vpack.c.b16 %v844, %v843
        %861 = vmatpush.bf16.msra.mxu0 %v852
        %862 = vmatpush.bf16.msra.mxu0 %v851
        %863 = vmatpush.bf16.msra.mxu0 %v850
        %864 = vmatpush.bf16.msra.mxu0 %v849
        %865 = vmatpush.bf16.msra.mxu0 %v848
        %866 = vmatpush.bf16.msra.mxu0 %v847
        %867 = vmatpush.bf16.msra.mxu0 %v846
        %868 = vmatpush.bf16.msra.mxu0 %v845
        %869 = vmatmul.bf16.gmra.mxu0 %v761
        %v870 = vpop.f32.mrf.mxu0
        %v871 = vadd.f32 %v811, %v870
        %v872 = vpop.f32.mrf.mxu0
        %v873 = vadd.f32 %v811, %v872
        %874 = vmatmul.bf16.gmra.mxu0 %v762
        %v875 = vpop.f32.mrf.mxu0
        %v876 = vadd.f32 %v811, %v875
        %v877 = vpop.f32.mrf.mxu0
        %v878 = vadd.f32 %v811, %v877
        %879 = vmatmul.bf16.gmra.mxu0 %v763
        %v880 = vpop.f32.mrf.mxu0
        %v881 = vadd.f32 %v811, %v880
        %v882 = vpop.f32.mrf.mxu0
        %v883 = vadd.f32 %v811, %v882
        %884 = vmatmul.bf16.gmra.mxu0 %v764
        %v885 = vpop.f32.mrf.mxu0
        %v886 = vadd.f32 %v811, %v885
        %v887 = vpop.f32.mrf.mxu0
        %v888 = vadd.f32 %v811, %v887
        %889 = vmatmul.bf16.gmra.mxu0 %v765
        %v890 = vpop.f32.mrf.mxu0
        %v891 = vadd.f32 %v811, %v890
        %v892 = vpop.f32.mrf.mxu0
        %v893 = vadd.f32 %v811, %v892
        %894 = vmatmul.bf16.gmra.mxu0 %v766
        %v895 = vpop.f32.mrf.mxu0
        %v896 = vadd.f32 %v811, %v895
        %v897 = vpop.f32.mrf.mxu0
        %v898 = vadd.f32 %v811, %v897
        %899 = vmatmul.bf16.gmra.mxu0 %v767
        %v900 = vpop.f32.mrf.mxu0
        %v901 = vadd.f32 %v811, %v900
        %v902 = vpop.f32.mrf.mxu0
        %v903 = vadd.f32 %v811, %v902
        %904 = vmatmul.bf16.gmra.mxu0 %v768
        %v905 = vpop.f32.mrf.mxu0
        %v906 = vadd.f32 %v811, %v905
        %v907 = vpop.f32.mrf.mxu0
        %v908 = vadd.f32 %v811, %v907
        %909 = vmatmul.bf16.gmra.mxu0 %v769
        %v910 = vpop.f32.mrf.mxu0
        %v911 = vadd.f32 %v811, %v910
        %v912 = vpop.f32.mrf.mxu0
        %v913 = vadd.f32 %v811, %v912
        %914 = vmatmul.bf16.gmra.mxu0 %v770
        %v915 = vpop.f32.mrf.mxu0
        %v916 = vadd.f32 %v811, %v915
        %v917 = vpop.f32.mrf.mxu0
        %v918 = vadd.f32 %v811, %v917
        %919 = vmatmul.bf16.gmra.mxu0 %v771
        %v920 = vpop.f32.mrf.mxu0
        %v921 = vadd.f32 %v811, %v920
        %v922 = vpop.f32.mrf.mxu0
        %v923 = vadd.f32 %v811, %v922
        %924 = vmatmul.bf16.gmra.mxu0 %v772
        %v925 = vpop.f32.mrf.mxu0
        %v926 = vadd.f32 %v811, %v925
        %v927 = vpop.f32.mrf.mxu0
        %v928 = vadd.f32 %v811, %v927
        %929 = vmatmul.bf16.gmra.mxu0 %v773
        %v930 = vpop.f32.mrf.mxu0
        %v931 = vadd.f32 %v811, %v930
        %v932 = vpop.f32.mrf.mxu0
        %v933 = vadd.f32 %v811, %v932
        %934 = vmatmul.bf16.gmra.mxu0 %v774
        %v935 = vpop.f32.mrf.mxu0
        %v936 = vadd.f32 %v811, %v935
        %v937 = vpop.f32.mrf.mxu0
        %v938 = vadd.f32 %v811, %v937
        %939 = vmatmul.bf16.gmra.mxu0 %v775
        %v940 = vpop.f32.mrf.mxu0
        %v941 = vadd.f32 %v811, %v940
        %v942 = vpop.f32.mrf.mxu0
        %v943 = vadd.f32 %v811, %v942
        %944 = vmatmul.bf16.gmra.mxu0 %v776
        %v945 = vpop.f32.mrf.mxu0
        %v946 = vadd.f32 %v811, %v945
        %v947 = vpop.f32.mrf.mxu0
        %v948 = vadd.f32 %v811, %v947
        %949 = vmatmul.bf16.gmra.mxu0 %v777
        %v950 = vpop.f32.mrf.mxu0
        %v951 = vadd.f32 %v811, %v950
        %v952 = vpop.f32.mrf.mxu0
        %v953 = vadd.f32 %v811, %v952
        %954 = vmatmul.bf16.gmra.mxu0 %v778
        %v955 = vpop.f32.mrf.mxu0
        %v956 = vadd.f32 %v811, %v955
        %v957 = vpop.f32.mrf.mxu0
        %v958 = vadd.f32 %v811, %v957
        %959 = vmatmul.bf16.gmra.mxu0 %v779
        %v960 = vpop.f32.mrf.mxu0
        %v961 = vadd.f32 %v811, %v960
        %v962 = vpop.f32.mrf.mxu0
        %v963 = vadd.f32 %v811, %v962
        %964 = vmatmul.bf16.gmra.mxu0 %v780
        %v965 = vpop.f32.mrf.mxu0
        %v966 = vadd.f32 %v811, %v965
        %v967 = vpop.f32.mrf.mxu0
        %v968 = vadd.f32 %v811, %v967
        %969 = vmatmul.bf16.gmra.mxu0 %v781
        %v970 = vpop.f32.mrf.mxu0
        %v971 = vadd.f32 %v811, %v970
        %v972 = vpop.f32.mrf.mxu0
        %v973 = vadd.f32 %v811, %v972
        %974 = vmatmul.bf16.gmra.mxu0 %v782
        %v975 = vpop.f32.mrf.mxu0
        %v976 = vadd.f32 %v811, %v975
        %v977 = vpop.f32.mrf.mxu0
        %v978 = vadd.f32 %v811, %v977
        %979 = vmatmul.bf16.gmra.mxu0 %v783
        %v980 = vpop.f32.mrf.mxu0
        %v981 = vadd.f32 %v811, %v980
        %v982 = vpop.f32.mrf.mxu0
        %v983 = vadd.f32 %v811, %v982
        %984 = vmatmul.bf16.gmra.mxu0 %v784
        %v985 = vpop.f32.mrf.mxu0
        %v986 = vadd.f32 %v811, %v985
        %v987 = vpop.f32.mrf.mxu0
        %v988 = vadd.f32 %v811, %v987
        %989 = vmatmul.bf16.gmra.mxu0 %v785
        %v990 = vpop.f32.mrf.mxu0
        %v991 = vadd.f32 %v811, %v990
        %v992 = vpop.f32.mrf.mxu0
        %v993 = vadd.f32 %v811, %v992
        %994 = vmatmul.bf16.gmra.mxu0 %v786
        %v995 = vpop.f32.mrf.mxu0
        %v996 = vadd.f32 %v811, %v995
        %v997 = vpop.f32.mrf.mxu0
        %v998 = vadd.f32 %v811, %v997
        %999 = vmatmul.bf16.gmra.mxu0 %v787
        %v1000 = vpop.f32.mrf.mxu0
        %v1001 = vadd.f32 %v811, %v1000
        %v1002 = vpop.f32.mrf.mxu0
        %v1003 = vadd.f32 %v811, %v1002
        %1004 = vmatmul.bf16.gmra.mxu0 %v788
        %v1005 = vpop.f32.mrf.mxu0
        %v1006 = vadd.f32 %v811, %v1005
        %v1007 = vpop.f32.mrf.mxu0
        %v1008 = vadd.f32 %v811, %v1007
        %1009 = vmatmul.bf16.gmra.mxu0 %v789
        %v1010 = vpop.f32.mrf.mxu0
        %v1011 = vadd.f32 %v811, %v1010
        %v1012 = vpop.f32.mrf.mxu0
        %v1013 = vadd.f32 %v811, %v1012
        %1014 = vmatmul.bf16.gmra.mxu0 %v790
        %v1015 = vpop.f32.mrf.mxu0
        %v1016 = vadd.f32 %v811, %v1015
        %v1017 = vpop.f32.mrf.mxu0
        %v1018 = vadd.f32 %v811, %v1017
        %1019 = vmatmul.bf16.gmra.mxu0 %v791
        %v1020 = vpop.f32.mrf.mxu0
        %v1021 = vadd.f32 %v811, %v1020
        %v1022 = vpop.f32.mrf.mxu0
        %v1023 = vadd.f32 %v811, %v1022
        %1024 = vmatmul.bf16.gmra.mxu0 %v792
        %v1025 = vpop.f32.mrf.mxu0
        %v1026 = vadd.f32 %v811, %v1025
        %v1027 = vpop.f32.mrf.mxu0
        %v1028 = vadd.f32 %v811, %v1027
        %1029 = vdwg.mxu0
        %1030 = vst [vmem:[%s218] sm:$0xff] %v871
        %1031 = vst [vmem:[%s218 + $0x8] sm:$0xff] %v873
        %1032 = vst [vmem:[%s218 + $0x10] sm:$0xff] %v876
        %1033 = vst [vmem:[%s218 + $0x18] sm:$0xff] %v878
        %1034 = vst [vmem:[%s218 + $0x20] sm:$0xff] %v881
        %1035 = vst [vmem:[%s218 + $0x28] sm:$0xff] %v883
        %1036 = vst [vmem:[%s218 + $0x30] sm:$0xff] %v886
        %1037 = vst [vmem:[%s218 + $0x38] sm:$0xff] %v888
        %1038 = vst [vmem:[%s218 + $0x40] sm:$0xff] %v891
        %1039 = vst [vmem:[%s218 + $0x48] sm:$0xff] %v893
        %1040 = vst [vmem:[%s218 + $0x50] sm:$0xff] %v896
        %1041 = vst [vmem:[%s218 + $0x58] sm:$0xff] %v898
        %1042 = vst [vmem:[%s218 + $0x60] sm:$0xff] %v901
        %1043 = vst [vmem:[%s218 + $0x68] sm:$0xff] %v903
        %1044 = vst [vmem:[%s218 + $0x70] sm:$0xff] %v906
        %1045 = vst [vmem:[%s218 + $0x78] sm:$0xff] %v908
        %1046 = vst [vmem:[%s218 + $0x80] sm:$0xff] %v911
        %1047 = vst [vmem:[%s218 + $0x88] sm:$0xff] %v913
        %1048 = vst [vmem:[%s218 + $0x90] sm:$0xff] %v916
        %1049 = vst [vmem:[%s218 + $0x98] sm:$0xff] %v918
        %1050 = vst [vmem:[%s218 + $0xa0] sm:$0xff] %v921
        %1051 = vst [vmem:[%s218 + $0xa8] sm:$0xff] %v923
        %1052 = vst [vmem:[%s218 + $0xb0] sm:$0xff] %v926
        %1053 = vst [vmem:[%s218 + $0xb8] sm:$0xff] %v928
        %1054 = vst [vmem:[%s218 + $0xc0] sm:$0xff] %v931
        %1055 = vst [vmem:[%s218 + $0xc8] sm:$0xff] %v933
        %1056 = vst [vmem:[%s218 + $0xd0] sm:$0xff] %v936
        %1057 = vst [vmem:[%s218 + $0xd8] sm:$0xff] %v938
        %1058 = vst [vmem:[%s218 + $0xe0] sm:$0xff] %v941
        %1059 = vst [vmem:[%s218 + $0xe8] sm:$0xff] %v943
        %1060 = vst [vmem:[%s218 + $0xf0] sm:$0xff] %v946
        %1061 = vst [vmem:[%s218 + $0xf8] sm:$0xff] %v948
        %1062 = vst [vmem:[%s218 + $0x100] sm:$0xff] %v951
        %1063 = vst [vmem:[%s218 + $0x108] sm:$0xff] %v953
        %1064 = vst [vmem:[%s218 + $0x110] sm:$0xff] %v956
        %1065 = vst [vmem:[%s218 + $0x118] sm:$0xff] %v958
        %1066 = vst [vmem:[%s218 + $0x120] sm:$0xff] %v961
        %1067 = vst [vmem:[%s218 + $0x128] sm:$0xff] %v963
        %1068 = vst [vmem:[%s218 + $0x130] sm:$0xff] %v966
        %1069 = vst [vmem:[%s218 + $0x138] sm:$0xff] %v968
        %1070 = vst [vmem:[%s218 + $0x140] sm:$0xff] %v971
        %1071 = vst [vmem:[%s218 + $0x148] sm:$0xff] %v973
        %1072 = vst [vmem:[%s218 + $0x150] sm:$0xff] %v976
        %1073 = vst [vmem:[%s218 + $0x158] sm:$0xff] %v978
        %1074 = vst [vmem:[%s218 + $0x160] sm:$0xff] %v981
        %1075 = vst [vmem:[%s218 + $0x168] sm:$0xff] %v983
        %1076 = vst [vmem:[%s218 + $0x170] sm:$0xff] %v986
        %1077 = vst [vmem:[%s218 + $0x178] sm:$0xff] %v988
        %1078 = vst [vmem:[%s218 + $0x180] sm:$0xff] %v991
        %1079 = vst [vmem:[%s218 + $0x188] sm:$0xff] %v993
        %1080 = vst [vmem:[%s218 + $0x190] sm:$0xff] %v996
        %1081 = vst [vmem:[%s218 + $0x198] sm:$0xff] %v998
        %1082 = vst [vmem:[%s218 + $0x1a0] sm:$0xff] %v1001
        %1083 = vst [vmem:[%s218 + $0x1a8] sm:$0xff] %v1003
        %1084 = vst [vmem:[%s218 + $0x1b0] sm:$0xff] %v1006
        %1085 = vst [vmem:[%s218 + $0x1b8] sm:$0xff] %v1008
        %1086 = vst [vmem:[%s218 + $0x1c0] sm:$0xff] %v1011
        %1087 = vst [vmem:[%s218 + $0x1c8] sm:$0xff] %v1013
        %1088 = vst [vmem:[%s218 + $0x1d0] sm:$0xff] %v1016
        %1089 = vst [vmem:[%s218 + $0x1d8] sm:$0xff] %v1018
        %1090 = vst [vmem:[%s218 + $0x1e0] sm:$0xff] %v1021
        %1091 = vst [vmem:[%s218 + $0x1e8] sm:$0xff] %v1023
        %1092 = vst [vmem:[%s218 + $0x1f0] sm:$0xff] %v1026
        %1093 = vst [vmem:[%s218 + $0x1f8] sm:$0xff] %v1028
        %s1094 = sand.u32 %s137, 1
        %s1095 = scalar_lea.sflag [#allocation3], %s1094
        %s1096 = sand.u32 %s137, 1
        %s1097 = smul.addr %s1096, 512
        %s1098 = scalar_lea.vmem [#allocation2], %s1097
        // Predicated region
        $region41: #{tpu_custom_call.1} parent=39 // pred_check
          %p1099 = pneg %p147
        $region42: #{tpu_custom_call.1} parent=39 // pred_check_branch
          %1101 = sbr.rel (%p1099) target = $region44
        $region43: #{tpu_custom_call.1} parent=39 // pred_region
          %s1102 = smul.u32 64, %s19
          %1104 = vsyncadd %s1095, 0
          %s1105 = smul.addr %s1102, 8
          %s1106 = scalar_lea.hbm %s5, %s1105
          %s1107 = sshll.u32 %s1098, 4
          %s1108 = int_to_ptr.vmem [resolvable:$true] %s1107
          %s1109 = sshll.u32 %s1106, 4
          %s1110 = int_to_ptr.hbm [resolvable:$true] %s1109
          %1115 = dma.vmem_to_hbm [thread:$0]  %s1108, 8192, %s1110, %s1095, 128, 128, 8
        $region44: #{tpu_custom_call.1} parent=39 // pred_fallthru
          _
      $region40: #{tpu_custom_call.1} parent=5 // pred_fallthru
        _
      %p1116 = scmp.le.s32.totalorder 2, %s14
      // Predicated region
      $region45: #{tpu_custom_call.1} parent=5 // pred_check
        %p1117 = pneg %p1116
      $region46: #{tpu_custom_call.1} parent=5 // pred_check_branch
        %1119 = sbr.rel (%p1117) target = $region48
      $region47: #{tpu_custom_call.1} parent=5 // pred_region
        %s1120 = ssub.s32 %s14, 2
        // Predicated region
        $region49: #{tpu_custom_call.1} parent=47 // pred_check
          %p1121 = pneg %p153
        $region50: #{tpu_custom_call.1} parent=47 // pred_check_branch
          %1123 = sbr.rel (%p1121) target = $region52
        $region51: #{tpu_custom_call.1} parent=47 // pred_region
          %s1124 = sand.u32 %s138, 1
          %s1125 = scalar_lea.sflag [#allocation3], %s1124
          %s1126 = sand.u32 %s138, 1
          %s1127 = smul.addr %s1126, 512
          %s1128 = scalar_lea.vmem [#allocation2], %s1127
          %1130 = dma.done %s1125, 8192
        $region52: #{tpu_custom_call.1} parent=47 // pred_fallthru
          _
      $region48: #{tpu_custom_call.1} parent=5 // pred_fallthru
        _
    $region6: #{tpu_custom_call.1} parent=1 // loop_footer
      %s18 = sadd.s32 1, %s14
    $region7: #{tpu_custom_call.1} parent=1 // loop_footer_branch
      %13 = sbr.rel target = $region3
    $region8: #{tpu_custom_call.1} parent=1 // loop_exit
      _
    %1131 = vsyncpa [#allocation3], 1
    %s1132 = scalar_lea.sflag [#allocation3], 1
    %1133 = vsyncpa %s1132, 1

</llo_original>
